<compile_context>
chip_gen: v7x
topology: tpu7x:2x2x1
jax: 0.10.0
libtpu: 0.0.40
codegen_flags: <defaults>
</compile_context>

<pallas_src>
import math

import jax
import jax.numpy as jnp
from jax.experimental import pallas as pl
from jax.experimental.pallas import tpu as pltpu

LANE = 128     # output lane width: N padded to a multiple of this (unmasked vst)
SUBLANE = 8    # sublane width for batch-tile rounding


def _round_up(x, m):
    return ((x + m - 1) // m) * m


# ----------------------------------------------------------------------------
# Kernel: out = sum_i x_i @ W_i + bias, f32 accumulation, one output tile.
# ----------------------------------------------------------------------------
def _make_fused_kernel(n_inputs):
    def kernel(*refs):
        xs = refs[:n_inputs]
        ws = refs[n_inputs:2 * n_inputs]
        b_ref = refs[2 * n_inputs]
        o_ref = refs[2 * n_inputs + 1]
        # Cast x to the weight dtype (no-op for f32, VPU cast for bf16) so the
        # MXU runs its fast path; accumulate in f32.
        acc = jnp.dot(xs[0][...].astype(ws[0].dtype), ws[0][...],
                      preferred_element_type=jnp.float32)
        for x_ref, w_ref in zip(xs[1:], ws[1:]):
            acc = acc + jnp.dot(x_ref[...].astype(w_ref.dtype), w_ref[...],
                                preferred_element_type=jnp.float32)
        o_ref[...] = acc + b_ref[...]          # bias add stays f32 (VPU)
    return kernel


# ----------------------------------------------------------------------------
# Parameter construction (mirrors torch init) and one-time weight packing.
# ----------------------------------------------------------------------------
def xavier_uniform(key, shape, gain=1.0, dtype=jnp.float32):
    fan_out, fan_in = shape
    bound = gain * math.sqrt(6.0 / (fan_in + fan_out))
    return jax.random.uniform(key, shape, dtype=dtype, minval=-bound, maxval=bound)


def make_params(key, in_const, in_neg, in_side, out_const, out_neg, out_side, wmag=1.0):
    ks = jax.random.split(key, 8)
    return dict(
        c2s=xavier_uniform(ks[0], (out_side, in_const), wmag),
        n2s=xavier_uniform(ks[1], (out_side, in_neg), wmag),
        c2c=xavier_uniform(ks[2], (out_const, in_const), wmag),
        s2c=xavier_uniform(ks[3], (out_const, in_side), wmag),
        s1s=xavier_uniform(ks[4], (out_side, in_side), wmag),
        s2s=xavier_uniform(ks[5], (out_side, in_side), wmag),
        n2n=xavier_uniform(ks[6], (out_neg, in_neg), wmag),
        s2n=xavier_uniform(ks[7], (out_neg, in_side), wmag),
        sbias=jnp.zeros((1, out_side), jnp.float32),
        cbias=jnp.zeros((1, out_const), jnp.float32),
    )


def pack_symmetric_weights(params, compute_dtype=jnp.float32):
    """Fold the SymmetricLayer into per-input weight row-blocks + one bias row.

    Output columns: [ out_const | out_neg | out_side (l) | out_side (r) ],
    lane-padded to a multiple of 128.  Done once; reused across calls.
    Weights are stored in `compute_dtype` (f32 or bf16); bias stays f32.
    """
    c2c, c2s = params["c2c"], params["c2s"]
    n2n, n2s = params["n2n"], params["n2s"]
    s2c, s2n = params["s2c"], params["s2n"]
    s1s, s2s = params["s1s"], params["s2s"]

    out_const, in_const = c2c.shape
    out_neg, in_neg = n2n.shape
    out_side, in_side = s1s.shape

    N = out_const + out_neg + 2 * out_side
    N_pad = max(_round_up(N, LANE), LANE)

    def pad_n(block):
        k = block.shape[0]
        return (jnp.zeros((k, N_pad), jnp.float32).at[:, :N].set(block)
                .astype(compute_dtype))

    z_cn = jnp.zeros((in_const, out_neg), jnp.float32)
    z_nc = jnp.zeros((in_neg, out_const), jnp.float32)

    w_c = pad_n(jnp.concatenate([c2c.T, z_cn, c2s.T, c2s.T], axis=1))
    w_n = pad_n(jnp.concatenate([z_nc, n2n.T, n2s.T, -n2s.T], axis=1))
    w_blocks = [w_c, w_n]
    if in_side > 0:
        w_l = pad_n(jnp.concatenate([0.5 * s2c.T, s2n.T, s1s.T, s2s.T], axis=1))
        w_r = pad_n(jnp.concatenate([0.5 * s2c.T, -s2n.T, s2s.T, s1s.T], axis=1))
        w_blocks += [w_l, w_r]

    # Torch module only adds cbias through the s2c path, which is skipped when
    # in_side == 0; mirror that semantics here.
    cbias = params["cbias"] if in_side > 0 else jnp.zeros_like(params["cbias"])
    b_all = jnp.concatenate(
        [cbias, jnp.zeros((1, out_neg), jnp.float32), params["sbias"], params["sbias"]],
        axis=1)
    b_pad = jnp.zeros((1, N_pad), jnp.float32).at[:, :N].set(b_all)

    meta = dict(out_const=out_const, out_neg=out_neg, out_side=out_side,
                N=N, N_pad=N_pad)
    return tuple(w_blocks), b_pad, meta


# ----------------------------------------------------------------------------
# Tiling / budgeting helpers.
# ----------------------------------------------------------------------------
def _choose_batch_tile(B):
    if B <= 64:
        return B                                   # one block (== full dim, legal)
    if B <= 1024:
        # >= 2 grid steps so both TensorCores get work on v7x; extra steps cost
        # only ~0.35 us each on single-TC v5e/v6e.
        return _round_up(-(-B // 2), SUBLANE)
    return 512                                     # measured mem-bound sweet spot


def _vmem_bytes_estimate(TB, N_pad, xs, ws):
    """Working-set estimate with VMEM (8,128) tile padding and buffer counts."""
    b = 0
    for x in xs:   # double-buffered x tiles
        b += 2 * _round_up(TB, SUBLANE) * _round_up(x.shape[1], LANE) * x.dtype.itemsize
    for w in ws:   # single-buffered resident weights
        b += _round_up(w.shape[0], SUBLANE) * w.shape[1] * w.dtype.itemsize
    b += SUBLANE * N_pad * 4                       # single-buffered bias row
    b += 2 * _round_up(TB, SUBLANE) * N_pad * 4    # double-buffered output tile
    return b


# ----------------------------------------------------------------------------
# Jitted performance path: returns the packed [B_pad, N_pad] f32 slab.
# ----------------------------------------------------------------------------
@jax.jit
def _fused_forward(w_blocks, b_pad, xs):
    B = xs[0].shape[0]
    N_pad = b_pad.shape[1]

    # Drop degenerate zero-width inputs (e.g. in_const == 0 or in_neg == 0).
    pairs = [(x, w) for x, w in zip(xs, w_blocks) if x.shape[1] > 0]
    if not pairs:
        return jnp.broadcast_to(b_pad, (B, N_pad)).astype(jnp.float32)

    TB = _choose_batch_tile(B)
    B_pad = _round_up(B, TB)
    if B_pad != B:
        # Only hit when the batch doesn't tile evenly; aligned batches pay no
        # extra x-side HBM traffic (no concat, no pad).
        pairs = [(jnp.zeros((B_pad, x.shape[1]), x.dtype).at[:B].set(x), w)
                 for x, w in pairs]

    xs_in = [x for x, _ in pairs]
    ws_in = [w for _, w in pairs]
    n_in = len(pairs)
    grid = (B_pad // TB,)

    x_specs = [pl.BlockSpec((TB, x.shape[1]), lambda i: (i, 0)) for x in xs_in]
    # Constant index_maps -> weights/bias stay resident; single-buffer them so
    # the resident weight costs 1x (not 2x) VMEM when the layer scales up.
    w_specs = [pl.BlockSpec(w.shape, lambda i: (0, 0), pipeline_mode=pl.Buffered(1))
               for w in ws_in]
    b_spec = pl.BlockSpec(b_pad.shape, lambda i: (0, 0), pipeline_mode=pl.Buffered(1))

    vmem_bytes = _vmem_bytes_estimate(TB, N_pad, xs_in, ws_in)
    # v7x has 64 MiB physical VMEM (32 MiB default scoped) -- keep the working
    # set well under that.
    if vmem_bytes > 48 * 1024 * 1024:
        # TODO(synk): for very large layer widths, add an N (or K) grid axis
        # instead of keeping the whole packed weight resident.
        raise ValueError(f"Working set {vmem_bytes} B exceeds the v7x VMEM budget.")
    vmem_limit = min(max(2 * vmem_bytes, 8 * 1024 * 1024), 64 * 1024 * 1024)

    k_total = sum(x.shape[1] for x in xs_in)
    bytes_accessed = (sum(x.size * x.dtype.itemsize for x in xs_in)
                      + sum(w.size * w.dtype.itemsize for w in ws_in)
                      + b_pad.size * b_pad.dtype.itemsize
                      + B_pad * N_pad * 4)
    cost = pl.CostEstimate(flops=2 * B_pad * k_total * N_pad,
                           transcendentals=0,
                           bytes_accessed=bytes_accessed)

    return pl.pallas_call(
        _make_fused_kernel(n_in),
        out_shape=jax.ShapeDtypeStruct((B_pad, N_pad), jnp.float32),
        grid_spec=pltpu.PrefetchScalarGridSpec(
            num_scalar_prefetch=0,
            grid=grid,
            in_specs=x_specs + w_specs + [b_spec],
            out_specs=pl.BlockSpec((TB, N_pad), lambda i: (i, 0)),
        ),
        compiler_params=pltpu.CompilerParams(
            dimension_semantics=("parallel",),
            vmem_limit_bytes=vmem_limit,
        ),
        cost_estimate=cost,
    )(*xs_in, *ws_in, b_pad)


def symmetric_layer_forward_packed(w_blocks, b_pad, *xs):
    """Performance path: returns the packed lane-dense [B_pad, N_pad] f32 slab."""
    return _fused_forward(tuple(w_blocks), b_pad, tuple(xs))


def split_outputs(out_all, B, meta):
    """Lazy consumer-side split of the packed slab into the 4 module outputs."""
    o0 = meta["out_const"]
    o1 = o0 + meta["out_neg"]
    o2 = o1 + meta["out_side"]
    o3 = o2 + meta["out_side"]
    out = out_all[:B]
    return out[:, :o0], out[:, o0:o1], out[:, o1:o2], out[:, o2:o3]


def symmetric_layer_forward(w_blocks, b_pad, meta, c, n, l, r):
    """API-parity wrapper (4 outputs). Perf-sensitive callers should consume the
    packed slab from symmetric_layer_forward_packed directly."""
    xs = (c, n) if len(w_blocks) == 2 else (c, n, l, r)
    out_all = symmetric_layer_forward_packed(w_blocks, b_pad, *xs)
    return split_outputs(out_all, c.shape[0], meta)


# ----------------------------------------------------------------------------
# Pure-jnp reference mirroring the PyTorch forward (for verification).
# ----------------------------------------------------------------------------
def reference_forward(params, c, n, l, r):
    in_side = params["s1s"].shape[1]
    c2s = c @ params["c2s"].T + params["sbias"]
    n2s = n @ params["n2s"].T
    if in_side > 0:
        s2c = ((l + r) / 2) @ params["s2c"].T + params["cbias"]
        s2n = (l - r) @ params["s2n"].T
        s2l = l @ params["s1s"].T + r @ params["s2s"].T
        s2r = r @ params["s1s"].T + l @ params["s2s"].T
    else:
        s2c = s2n = s2l = s2r = 0.0
    return (s2c + c @ params["c2c"].T,
            s2n + n @ params["n2n"].T,
            c2s + n2s + s2l,
            c2s - n2s + s2r)


if __name__ == "__main__":
    B = 8
    in_const, in_neg, in_side = 4, 4, 16
    out_const, out_neg, out_side = 4, 4, 16

    key = jax.random.PRNGKey(0)
    kp, kc, kn, kl, kr = jax.random.split(key, 5)

    params = make_params(kp, in_const, in_neg, in_side,
                         out_const, out_neg, out_side, wmag=1.0)

    c = jax.random.normal(kc, (B, in_const), jnp.float32)
    n = jax.random.normal(kn, (B, in_neg), jnp.float32)
    l = jax.random.normal(kl, (B, in_side), jnp.float32)
    r = jax.random.normal(kr, (B, in_side), jnp.float32)

    refs = reference_forward(params, c, n, l, r)

    # --- f32 path (bit-level parity with the torch-style reference) ----------
    w_blocks, b_pad, meta = pack_symmetric_weights(params, compute_dtype=jnp.float32)
    slab = symmetric_layer_forward_packed(w_blocks, b_pad, c, n, l, r)
    slab = jax.block_until_ready(slab)
    outs = split_outputs(slab, B, meta)
    for name, o, ref in zip(("out_const", "out_neg", "out_l", "out_r"), outs, refs):
        assert o.shape == ref.shape and o.dtype == ref.dtype, name
        assert jnp.allclose(o, ref, atol=1e-5, rtol=1e-5), name

    # --- bf16-weight / f32-accumulate path (MXU fast path on v6e/v7x) --------
    # Note: reassociated reduction + bf16 rounding => looser tolerance expected.
    w_bf16, b_bf16, meta_bf16 = pack_symmetric_weights(params, compute_dtype=jnp.bfloat16)
    slab_bf16 = symmetric_layer_forward_packed(w_bf16, b_bf16, c, n, l, r)
    slab_bf16 = jax.block_until_ready(slab_bf16)
    outs_bf16 = split_outputs(slab_bf16, B, meta_bf16)
    for name, o, ref in zip(("out_const", "out_neg", "out_l", "out_r"), outs_bf16, refs):
        assert o.shape == ref.shape, name
        assert jnp.allclose(o, ref, atol=1e-1, rtol=1e-1), name

    print("KERNEL_OK")
</pallas_src>

<mosaic_0001>
module attributes {stable_mosaic.version = 11 : i64} {
  func.func @kernel(%arg0: i32, %arg1: memref<8x4xf32, #tpu.memory_space<vmem>>, %arg2: memref<8x4xf32, #tpu.memory_space<vmem>>, %arg3: memref<8x16xf32, #tpu.memory_space<vmem>>, %arg4: memref<8x16xf32, #tpu.memory_space<vmem>>, %arg5: memref<4x128xf32, #tpu.memory_space<vmem>>, %arg6: memref<4x128xf32, #tpu.memory_space<vmem>>, %arg7: memref<16x128xf32, #tpu.memory_space<vmem>>, %arg8: memref<16x128xf32, #tpu.memory_space<vmem>>, %arg9: memref<1x128xf32, #tpu.memory_space<vmem>>, %arg10: memref<8x128xf32, #tpu.memory_space<vmem>>) attributes {dimension_semantics = [#tpu.dimension_semantics<parallel>], iteration_bounds = array<i64: 1>, scalar_prefetch = 0 : i64, scratch_operands = 0 : i64, tpu.core_type = #tpu.core_type<tc>, window_params = [{transform_indices = @transform_0, window_bounds = array<i64: 8, 4>}, {transform_indices = @transform_1, window_bounds = array<i64: 8, 4>}, {transform_indices = @transform_2, window_bounds = array<i64: 8, 16>}, {transform_indices = @transform_3, window_bounds = array<i64: 8, 16>}, {pipeline_mode = #tpu.pipeline_mode<synchronous>, transform_indices = @transform_4, window_bounds = array<i64: 4, 128>}, {pipeline_mode = #tpu.pipeline_mode<synchronous>, transform_indices = @transform_5, window_bounds = array<i64: 4, 128>}, {pipeline_mode = #tpu.pipeline_mode<synchronous>, transform_indices = @transform_6, window_bounds = array<i64: 16, 128>}, {pipeline_mode = #tpu.pipeline_mode<synchronous>, transform_indices = @transform_7, window_bounds = array<i64: 16, 128>}, {pipeline_mode = #tpu.pipeline_mode<synchronous>, transform_indices = @transform_8, window_bounds = array<i64: 1, 128>}, {transform_indices = @transform_9, window_bounds = array<i64: 8, 128>}]} {
    %c0 = arith.constant 0 : index
    %c0_0 = arith.constant 0 : index
    %0 = vector.load %arg1[%c0, %c0_0] : memref<8x4xf32, #tpu.memory_space<vmem>>, vector<8x4xf32>
    %c0_1 = arith.constant 0 : index
    %c0_2 = arith.constant 0 : index
    %1 = vector.load %arg5[%c0_1, %c0_2] : memref<4x128xf32, #tpu.memory_space<vmem>>, vector<4x128xf32>
    %cst = arith.constant dense<0.000000e+00> : vector<8x128xf32>
    %2 = tpu.matmul %0, %1, %cst {dimension_numbers = #tpu.dot_dimension_numbers<[1], [0], [0], [1], [0, 0, 1, 1], [], []>} : vector<8x4xf32>, vector<4x128xf32>, vector<8x128xf32> -> vector<8x128xf32>
    %c0_3 = arith.constant 0 : index
    %c0_4 = arith.constant 0 : index
    %3 = vector.load %arg2[%c0_3, %c0_4] : memref<8x4xf32, #tpu.memory_space<vmem>>, vector<8x4xf32>
    %c0_5 = arith.constant 0 : index
    %c0_6 = arith.constant 0 : index
    %4 = vector.load %arg6[%c0_5, %c0_6] : memref<4x128xf32, #tpu.memory_space<vmem>>, vector<4x128xf32>
    %cst_7 = arith.constant dense<0.000000e+00> : vector<8x128xf32>
    %5 = tpu.matmul %3, %4, %cst_7 {dimension_numbers = #tpu.dot_dimension_numbers<[1], [0], [0], [1], [0, 0, 1, 1], [], []>} : vector<8x4xf32>, vector<4x128xf32>, vector<8x128xf32> -> vector<8x128xf32>
    %6 = arith.addf %2, %5 : vector<8x128xf32>
    %c0_8 = arith.constant 0 : index
    %c0_9 = arith.constant 0 : index
    %7 = vector.load %arg3[%c0_8, %c0_9] : memref<8x16xf32, #tpu.memory_space<vmem>>, vector<8x16xf32>
    %c0_10 = arith.constant 0 : index
    %c0_11 = arith.constant 0 : index
    %8 = vector.load %arg7[%c0_10, %c0_11] : memref<16x128xf32, #tpu.memory_space<vmem>>, vector<16x128xf32>
    %cst_12 = arith.constant dense<0.000000e+00> : vector<8x128xf32>
    %9 = tpu.matmul %7, %8, %cst_12 {dimension_numbers = #tpu.dot_dimension_numbers<[1], [0], [0], [1], [0, 0, 1, 1], [], []>} : vector<8x16xf32>, vector<16x128xf32>, vector<8x128xf32> -> vector<8x128xf32>
    %10 = arith.addf %6, %9 : vector<8x128xf32>
    %c0_13 = arith.constant 0 : index
    %c0_14 = arith.constant 0 : index
    %11 = vector.load %arg4[%c0_13, %c0_14] : memref<8x16xf32, #tpu.memory_space<vmem>>, vector<8x16xf32>
    %c0_15 = arith.constant 0 : index
    %c0_16 = arith.constant 0 : index
    %12 = vector.load %arg8[%c0_15, %c0_16] : memref<16x128xf32, #tpu.memory_space<vmem>>, vector<16x128xf32>
    %cst_17 = arith.constant dense<0.000000e+00> : vector<8x128xf32>
    %13 = tpu.matmul %11, %12, %cst_17 {dimension_numbers = #tpu.dot_dimension_numbers<[1], [0], [0], [1], [0, 0, 1, 1], [], []>} : vector<8x16xf32>, vector<16x128xf32>, vector<8x128xf32> -> vector<8x128xf32>
    %14 = arith.addf %10, %13 : vector<8x128xf32>
    %c0_18 = arith.constant 0 : index
    %c0_19 = arith.constant 0 : index
    %15 = vector.load %arg9[%c0_18, %c0_19] : memref<1x128xf32, #tpu.memory_space<vmem>>, vector<1x128xf32>
    %16 = vector.broadcast %15 : vector<1x128xf32> to vector<8x128xf32>
    %17 = arith.addf %14, %16 : vector<8x128xf32>
    %c0_20 = arith.constant 0 : index
    %c0_21 = arith.constant 0 : index
    %18 = vector.load %arg10[%c0_20, %c0_21] : memref<8x128xf32, #tpu.memory_space<vmem>>, vector<8x128xf32>
    tpu.vector_store %arg10[%c0_20, %c0_21], %17 {strides = array<i32>} : memref<8x128xf32, #tpu.memory_space<vmem>>, vector<8x128xf32>,
    return
  }
  func.func @transform_0(%arg0: i32) -> (i32, i32) {
    %c0_i32 = arith.constant 0 : i32
    %c0_i32_0 = arith.constant 0 : i32
    return %arg0, %c0_i32 : i32, i32
  }
  func.func @transform_1(%arg0: i32) -> (i32, i32) {
    %c0_i32 = arith.constant 0 : i32
    %c0_i32_0 = arith.constant 0 : i32
    return %arg0, %c0_i32 : i32, i32
  }
  func.func @transform_2(%arg0: i32) -> (i32, i32) {
    %c0_i32 = arith.constant 0 : i32
    %c0_i32_0 = arith.constant 0 : i32
    return %arg0, %c0_i32 : i32, i32
  }
  func.func @transform_3(%arg0: i32) -> (i32, i32) {
    %c0_i32 = arith.constant 0 : i32
    %c0_i32_0 = arith.constant 0 : i32
    return %arg0, %c0_i32 : i32, i32
  }
  func.func @transform_4(%arg0: i32) -> (i32, i32) {
    %c0_i32 = arith.constant 0 : i32
    %c0_i32_0 = arith.constant 0 : i32
    %c0_i32_1 = arith.constant 0 : i32
    return %c0_i32, %c0_i32_0 : i32, i32
  }
  func.func @transform_5(%arg0: i32) -> (i32, i32) {
    %c0_i32 = arith.constant 0 : i32
    %c0_i32_0 = arith.constant 0 : i32
    %c0_i32_1 = arith.constant 0 : i32
    return %c0_i32, %c0_i32_0 : i32, i32
  }
  func.func @transform_6(%arg0: i32) -> (i32, i32) {
    %c0_i32 = arith.constant 0 : i32
    %c0_i32_0 = arith.constant 0 : i32
    %c0_i32_1 = arith.constant 0 : i32
    return %c0_i32, %c0_i32_0 : i32, i32
  }
  func.func @transform_7(%arg0: i32) -> (i32, i32) {
    %c0_i32 = arith.constant 0 : i32
    %c0_i32_0 = arith.constant 0 : i32
    %c0_i32_1 = arith.constant 0 : i32
    return %c0_i32, %c0_i32_0 : i32, i32
  }
  func.func @transform_8(%arg0: i32) -> (i32, i32) {
    %c0_i32 = arith.constant 0 : i32
    %c0_i32_0 = arith.constant 0 : i32
    %c0_i32_1 = arith.constant 0 : i32
    return %c0_i32, %c0_i32_0 : i32, i32
  }
  func.func @transform_9(%arg0: i32) -> (i32, i32) {
    %c0_i32 = arith.constant 0 : i32
    %c0_i32_0 = arith.constant 0 : i32
    return %arg0, %c0_i32 : i32, i32
  }
}

</mosaic_0001>

<llo_original>
// kernel: _fused_forward.1
$region0: #{_fused_forward.1}
  #allocation0 [shape = 'u32[]', space=smem, size = 0x4, offset = 0x4, fixed_abs, tag = 'smem constant byte address 0x4 - core index']
  #allocation1 [shape = 'u32[144,128]{1,0:T(1,128)}', space=vmem, size = 0x12000, scoped, tag = 'internal scratch']
  %s0 = inlined_call_operand.vmem [shape: f32[8,4], index: 0, kind: input, shape index: {}]
  %s1 = inlined_call_operand.vmem [shape: f32[8,4], index: 1, kind: input, shape index: {}]
  %s2 = inlined_call_operand.vmem [shape: f32[8,16], index: 2, kind: input, shape index: {}]
  %s3 = inlined_call_operand.vmem [shape: f32[8,16], index: 3, kind: input, shape index: {}]
  %s4 = inlined_call_operand.hbm [shape: f32[4,128], index: 4, kind: input, shape index: {}]
  %s5 = inlined_call_operand.hbm [shape: f32[4,128], index: 5, kind: input, shape index: {}]
  %s6 = inlined_call_operand.vmem [shape: f32[16,128], index: 6, kind: input, shape index: {}]
  %s7 = inlined_call_operand.vmem [shape: f32[16,128], index: 7, kind: input, shape index: {}]
  %s8 = inlined_call_operand.vmem [shape: f32[1,128], index: 8, kind: input, shape index: {}]
  %s9 = inlined_call_operand.hbm [shape: f32[8,128], index: 9, kind: output, shape index: {}]
  %s10 = sld [smem:[#allocation0]]
  $region54: #{_fused_forward.1} parent=0
    _
  %s12 = ssub.s32 1, %s10
  %s13 = scalar_select 0, %s12, %s10
  $region1: #{_fused_forward.1} parent=0
    #allocation2 [shape = 'u8[2048]{0}', space=vmem, size = 0x800, scoped, tag = 'input window, operand 4, single buffered']
    #allocation3 [shape = 's32[1]{0}', space=sflag, size = 0x4, scoped, tag = 'scoped memory for _fused_forward.1']
    #allocation4 [shape = 's32[1]{0}', space=sflag, size = 0x4, scoped, tag = 'scoped memory for _fused_forward.1']
    #allocation5 [shape = 'u8[2048]{0}', space=vmem, size = 0x800, scoped, tag = 'input window, operand 5, single buffered']
    #allocation6 [shape = 's32[1]{0}', space=sflag, size = 0x4, scoped, tag = 'scoped memory for _fused_forward.1']
    #allocation7 [shape = 'u8[4096]{0}', space=vmem, size = 0x1000, scoped, tag = 'output window, operand 0, single buffered']
    %14 = vsyncpa [#allocation3], 0
    %15 = vsyncpa [#allocation6], 0
    %16 = vsyncpa [#allocation4], 0
    // Predicated region
    $region2: #{_fused_forward.1} parent=1 // pred_check
      _
    $region3: #{_fused_forward.1} parent=1 // pred_check_branch
      %18 = sbr.rel (0) target = $region5
    $region4: #{_fused_forward.1} parent=1 // pred_region
      _
    $region5: #{_fused_forward.1} parent=1 // pred_fallthru
      _
    // Predicated region
    $region6: #{_fused_forward.1} parent=1 // pred_check
      _
    $region7: #{_fused_forward.1} parent=1 // pred_check_branch
      %20 = sbr.rel (0) target = $region9
    $region8: #{_fused_forward.1} parent=1 // pred_region
      _
    $region9: #{_fused_forward.1} parent=1 // pred_fallthru
      _
    // Predicated region
    $region10: #{_fused_forward.1} parent=1 // pred_check
      _
    $region11: #{_fused_forward.1} parent=1 // pred_check_branch
      %22 = sbr.rel (0) target = $region13
    $region12: #{_fused_forward.1} parent=1 // pred_region
      _
    $region13: #{_fused_forward.1} parent=1 // pred_fallthru
      _
    // Predicated region
    $region14: #{_fused_forward.1} parent=1 // pred_check
      _
    $region15: #{_fused_forward.1} parent=1 // pred_check_branch
      %24 = sbr.rel (0) target = $region17
    $region16: #{_fused_forward.1} parent=1 // pred_region
      _
    $region17: #{_fused_forward.1} parent=1 // pred_fallthru
      _
    // Predicated region
    $region18: #{_fused_forward.1} parent=1 // pred_check
      _
    $region19: #{_fused_forward.1} parent=1 // pred_check_branch
      %26 = sbr.rel (0) target = $region21
    $region20: #{_fused_forward.1} parent=1 // pred_region
      %s28 = ssub.s32 64, 64
      %29 = vsyncadd [#allocation3], %s28
      %s31 = sshll.u32 [#allocation2], 4
      %s32 = int_to_ptr.vmem [resolvable:$true] %s31
      %34 = dma.hbm_to_vmem [thread:$0]  %s4, 64, %s32, [#allocation3]
    $region21: #{_fused_forward.1} parent=1 // pred_fallthru
      _
    // Predicated region
    $region22: #{_fused_forward.1} parent=1 // pred_check
      _
    $region23: #{_fused_forward.1} parent=1 // pred_check_branch
      %36 = sbr.rel (0) target = $region25
    $region24: #{_fused_forward.1} parent=1 // pred_region
      %s38 = ssub.s32 64, 64
      %39 = vsyncadd [#allocation6], %s38
      %s41 = sshll.u32 [#allocation5], 4
      %s42 = int_to_ptr.vmem [resolvable:$true] %s41
      %44 = dma.hbm_to_vmem [thread:$0]  %s5, 64, %s42, [#allocation6]
    $region25: #{_fused_forward.1} parent=1 // pred_fallthru
      _
    // Predicated region
    $region26: #{_fused_forward.1} parent=1 // pred_check
      _
    $region27: #{_fused_forward.1} parent=1 // pred_check_branch
      %46 = sbr.rel (0) target = $region29
    $region28: #{_fused_forward.1} parent=1 // pred_region
      _
    $region29: #{_fused_forward.1} parent=1 // pred_fallthru
      _
    // Predicated region
    $region30: #{_fused_forward.1} parent=1 // pred_check
      _
    $region31: #{_fused_forward.1} parent=1 // pred_check_branch
      %48 = sbr.rel (0) target = $region33
    $region32: #{_fused_forward.1} parent=1 // pred_region
      _
    $region33: #{_fused_forward.1} parent=1 // pred_fallthru
      _
    // Predicated region
    $region34: #{_fused_forward.1} parent=1 // pred_check
      _
    $region35: #{_fused_forward.1} parent=1 // pred_check_branch
      %50 = sbr.rel (0) target = $region37
    $region36: #{_fused_forward.1} parent=1 // pred_region
      _
    $region37: #{_fused_forward.1} parent=1 // pred_fallthru
      _
    // Predicated region
    $region38: #{_fused_forward.1} parent=1 // pred_check
      _
    $region39: #{_fused_forward.1} parent=1 // pred_check_branch
      %52 = sbr.rel (0) target = $region41
    $region40: #{_fused_forward.1} parent=1 // pred_region
      %53 = dma.done [#allocation3], 64
    $region41: #{_fused_forward.1} parent=1 // pred_fallthru
      _
    // Predicated region
    $region42: #{_fused_forward.1} parent=1 // pred_check
      _
    $region43: #{_fused_forward.1} parent=1 // pred_check_branch
      %55 = sbr.rel (0) target = $region45
    $region44: #{_fused_forward.1} parent=1 // pred_region
      %56 = dma.done [#allocation6], 64
    $region45: #{_fused_forward.1} parent=1 // pred_fallthru
      _
    %v57 = vld [vmem:[%s0] sm:$0xff]
    %v58 = vld [vmem:[#allocation2] sm:$0xf]
    %v59 = vld [vmem:[%s1] sm:$0xff]
    %v60 = vld [vmem:[#allocation5] sm:$0xf]
    %vm61 = vcmask 31744
    %v63 = vsel %vm61, %v59, 0
    %vm65 = vcmask 1043456
    %v67 = vsel %vm65, %v60, 0
    %69 = vmatprep.subr.mxu0 0.0
    %70 = vmatpush1.msra.mxu0 %v67
    %71 = vmatprep.subr.mxu0 0.0
    %72 = vmatpush1.msra.mxu0 0.0
    %73 = vmatprep.subr.mxu0 0.0
    %74 = vmatpush1.msra.mxu0 0.0
    %75 = vmatprep.subr.mxu0 0.0
    %76 = vmatpush1.msra.mxu0 0.0
    %77 = vmatprep.subr.mxu0 0.0
    %78 = vmatpush1.msra.mxu0 0.0
    %79 = vmatprep.subr.mxu0 0.0
    %80 = vmatpush1.msra.mxu0 0.0
    %81 = vmatprep.subr.mxu0 0.0
    %82 = vmatpush1.msra.mxu0 0.0
    %83 = vmatprep.subr.mxu0 0.0
    %84 = vmatpush1.msra.mxu0 0.0
    %85 = vmatprep.subr.mxu0 0.0
    %86 = vmatpush1.msra.mxu0 0.0
    %87 = vmatprep.subr.mxu0 0.0
    %88 = vmatpush1.msra.mxu0 0.0
    %89 = vmatprep.subr.mxu0 0.0
    %90 = vmatpush1.msra.mxu0 0.0
    %91 = vmatprep.subr.mxu0 0.0
    %92 = vmatpush1.msra.mxu0 0.0
    %93 = vmatprep.subr.mxu0 0.0
    %94 = vmatpush1.msra.mxu0 0.0
    %95 = vmatprep.subr.mxu0 0.0
    %96 = vmatpush1.msra.mxu0 0.0
    %97 = vmatprep.subr.mxu0 0.0
    %98 = vmatpush1.msra.mxu0 0.0
    %99 = vmatprep.subr.mxu0 0.0
    %100 = vmatpush1.msra.mxu0 0.0
    %101 = vmatprep.subr.mxu0 0.0
    %102 = vmatpush1.msra.mxu0 0.0
    %103 = vmatprep.subr.mxu0 0.0
    %104 = vmatpush1.msra.mxu0 0.0
    %105 = vmatprep.subr.mxu0 0.0
    %106 = vmatpush1.msra.mxu0 0.0
    %107 = vmatprep.subr.mxu0 0.0
    %108 = vmatpush1.msra.mxu0 0.0
    %109 = vmatprep.subr.mxu0 0.0
    %110 = vmatpush1.msra.mxu0 0.0
    %111 = vmatprep.subr.mxu0 0.0
    %112 = vmatpush1.msra.mxu0 0.0
    %113 = vmatprep.subr.mxu0 0.0
    %114 = vmatpush1.msra.mxu0 0.0
    %115 = vmatprep.subr.mxu0 0.0
    %116 = vmatpush1.msra.mxu0 0.0
    %117 = vmatprep.subr.mxu0 0.0
    %118 = vmatpush1.msra.mxu0 0.0
    %119 = vmatprep.subr.mxu0 0.0
    %120 = vmatpush1.msra.mxu0 0.0
    %121 = vmatprep.subr.mxu0 0.0
    %122 = vmatpush1.msra.mxu0 0.0
    %123 = vmatprep.subr.mxu0 0.0
    %124 = vmatpush1.msra.mxu0 0.0
    %125 = vmatprep.subr.mxu0 0.0
    %126 = vmatpush1.msra.mxu0 0.0
    %127 = vmatprep.subr.mxu0 0.0
    %128 = vmatpush1.msra.mxu0 0.0
    %129 = vmatprep.subr.mxu0 0.0
    %130 = vmatpush1.msra.mxu0 0.0
    %131 = vmatprep.subr.mxu0 0.0
    %132 = vmatpush1.msra.mxu0 0.0
    %133 = vmatprep.mubr.f32.mxu0 0.0
    %134 = vmatmul.mubr.f32.gmra.mrb[0].mxu0 %v63
    %v135 = vpop.f32.mrb[0].mxu0
    %v136 = vadd.f32 0.0, %v135
    %v137 = vpop.f32.mrb[0].mxu0
    %138 = vdwg.mxu0
    %v140 = vsel %vm61, %v57, 0
    %v143 = vsel %vm65, %v58, 0
    %145 = vmatprep.subr.mxu0 0.0
    %146 = vmatpush1.msra.mxu0 %v143
    %147 = vmatprep.subr.mxu0 0.0
    %148 = vmatpush1.msra.mxu0 0.0
    %149 = vmatprep.subr.mxu0 0.0
    %150 = vmatpush1.msra.mxu0 0.0
    %151 = vmatprep.subr.mxu0 0.0
    %152 = vmatpush1.msra.mxu0 0.0
    %153 = vmatprep.subr.mxu0 0.0
    %154 = vmatpush1.msra.mxu0 0.0
    %155 = vmatprep.subr.mxu0 0.0
    %156 = vmatpush1.msra.mxu0 0.0
    %157 = vmatprep.subr.mxu0 0.0
    %158 = vmatpush1.msra.mxu0 0.0
    %159 = vmatprep.subr.mxu0 0.0
    %160 = vmatpush1.msra.mxu0 0.0
    %161 = vmatprep.subr.mxu0 0.0
    %162 = vmatpush1.msra.mxu0 0.0
    %163 = vmatprep.subr.mxu0 0.0
    %164 = vmatpush1.msra.mxu0 0.0
    %165 = vmatprep.subr.mxu0 0.0
    %166 = vmatpush1.msra.mxu0 0.0
    %167 = vmatprep.subr.mxu0 0.0
    %168 = vmatpush1.msra.mxu0 0.0
    %169 = vmatprep.subr.mxu0 0.0
    %170 = vmatpush1.msra.mxu0 0.0
    %171 = vmatprep.subr.mxu0 0.0
    %172 = vmatpush1.msra.mxu0 0.0
    %173 = vmatprep.subr.mxu0 0.0
    %174 = vmatpush1.msra.mxu0 0.0
    %175 = vmatprep.subr.mxu0 0.0
    %176 = vmatpush1.msra.mxu0 0.0
    %177 = vmatprep.subr.mxu0 0.0
    %178 = vmatpush1.msra.mxu0 0.0
    %179 = vmatprep.subr.mxu0 0.0
    %180 = vmatpush1.msra.mxu0 0.0
    %181 = vmatprep.subr.mxu0 0.0
    %182 = vmatpush1.msra.mxu0 0.0
    %183 = vmatprep.subr.mxu0 0.0
    %184 = vmatpush1.msra.mxu0 0.0
    %185 = vmatprep.subr.mxu0 0.0
    %186 = vmatpush1.msra.mxu0 0.0
    %187 = vmatprep.subr.mxu0 0.0
    %188 = vmatpush1.msra.mxu0 0.0
    %189 = vmatprep.subr.mxu0 0.0
    %190 = vmatpush1.msra.mxu0 0.0
    %191 = vmatprep.subr.mxu0 0.0
    %192 = vmatpush1.msra.mxu0 0.0
    %193 = vmatprep.subr.mxu0 0.0
    %194 = vmatpush1.msra.mxu0 0.0
    %195 = vmatprep.subr.mxu0 0.0
    %196 = vmatpush1.msra.mxu0 0.0
    %197 = vmatprep.subr.mxu0 0.0
    %198 = vmatpush1.msra.mxu0 0.0
    %199 = vmatprep.subr.mxu0 0.0
    %200 = vmatpush1.msra.mxu0 0.0
    %201 = vmatprep.subr.mxu0 0.0
    %202 = vmatpush1.msra.mxu0 0.0
    %203 = vmatprep.subr.mxu0 0.0
    %204 = vmatpush1.msra.mxu0 0.0
    %205 = vmatprep.subr.mxu0 0.0
    %206 = vmatpush1.msra.mxu0 0.0
    %207 = vmatprep.subr.mxu0 0.0
    %208 = vmatpush1.msra.mxu0 0.0
    %209 = vmatprep.mubr.f32.mxu0 0.0
    %210 = vmatmul.mubr.f32.gmra.mrb[0].mxu0 %v140
    %v211 = vpop.f32.mrb[0].mxu0
    %v212 = vadd.f32 %v136, %v211
    %v213 = vpop.f32.mrb[0].mxu0
    %214 = vdwg.mxu0
    %v215 = vld [vmem:[%s2] sm:$0xff]
    %v216 = vld [vmem:[%s6] sm:$0xff]
    %v217 = vld [vmem:[%s6 + $0x8] sm:$0xff]
    %vm218 = vcmask 130048
    %v220 = vsel %vm218, %v215, 0
    %222 = vmatprep.subr.mxu0 0.0
    %223 = vmatpush1.msra.mxu0 %v216
    %224 = vmatprep.subr.mxu0 0.0
    %225 = vmatpush1.msra.mxu0 %v217
    %226 = vmatprep.subr.mxu0 0.0
    %227 = vmatpush1.msra.mxu0 0.0
    %228 = vmatprep.subr.mxu0 0.0
    %229 = vmatpush1.msra.mxu0 0.0
    %230 = vmatprep.subr.mxu0 0.0
    %231 = vmatpush1.msra.mxu0 0.0
    %232 = vmatprep.subr.mxu0 0.0
    %233 = vmatpush1.msra.mxu0 0.0
    %234 = vmatprep.subr.mxu0 0.0
    %235 = vmatpush1.msra.mxu0 0.0
    %236 = vmatprep.subr.mxu0 0.0
    %237 = vmatpush1.msra.mxu0 0.0
    %238 = vmatprep.subr.mxu0 0.0
    %239 = vmatpush1.msra.mxu0 0.0
    %240 = vmatprep.subr.mxu0 0.0
    %241 = vmatpush1.msra.mxu0 0.0
    %242 = vmatprep.subr.mxu0 0.0
    %243 = vmatpush1.msra.mxu0 0.0
    %244 = vmatprep.subr.mxu0 0.0
    %245 = vmatpush1.msra.mxu0 0.0
    %246 = vmatprep.subr.mxu0 0.0
    %247 = vmatpush1.msra.mxu0 0.0
    %248 = vmatprep.subr.mxu0 0.0
    %249 = vmatpush1.msra.mxu0 0.0
    %250 = vmatprep.subr.mxu0 0.0
    %251 = vmatpush1.msra.mxu0 0.0
    %252 = vmatprep.subr.mxu0 0.0
    %253 = vmatpush1.msra.mxu0 0.0
    %254 = vmatprep.subr.mxu0 0.0
    %255 = vmatpush1.msra.mxu0 0.0
    %256 = vmatprep.subr.mxu0 0.0
    %257 = vmatpush1.msra.mxu0 0.0
    %258 = vmatprep.subr.mxu0 0.0
    %259 = vmatpush1.msra.mxu0 0.0
    %260 = vmatprep.subr.mxu0 0.0
    %261 = vmatpush1.msra.mxu0 0.0
    %262 = vmatprep.subr.mxu0 0.0
    %263 = vmatpush1.msra.mxu0 0.0
    %264 = vmatprep.subr.mxu0 0.0
    %265 = vmatpush1.msra.mxu0 0.0
    %266 = vmatprep.subr.mxu0 0.0
    %267 = vmatpush1.msra.mxu0 0.0
    %268 = vmatprep.subr.mxu0 0.0
    %269 = vmatpush1.msra.mxu0 0.0
    %270 = vmatprep.subr.mxu0 0.0
    %271 = vmatpush1.msra.mxu0 0.0
    %272 = vmatprep.subr.mxu0 0.0
    %273 = vmatpush1.msra.mxu0 0.0
    %274 = vmatprep.subr.mxu0 0.0
    %275 = vmatpush1.msra.mxu0 0.0
    %276 = vmatprep.subr.mxu0 0.0
    %277 = vmatpush1.msra.mxu0 0.0
    %278 = vmatprep.subr.mxu0 0.0
    %279 = vmatpush1.msra.mxu0 0.0
    %280 = vmatprep.subr.mxu0 0.0
    %281 = vmatpush1.msra.mxu0 0.0
    %282 = vmatprep.subr.mxu0 0.0
    %283 = vmatpush1.msra.mxu0 0.0
    %284 = vmatprep.subr.mxu0 0.0
    %285 = vmatpush1.msra.mxu0 0.0
    %286 = vmatprep.mubr.f32.mxu0 0.0
    %287 = vmatmul.mubr.f32.gmra.mrb[0].mxu0 %v220
    %v288 = vpop.f32.mrb[0].mxu0
    %v289 = vadd.f32 0.0, %v288
    %v290 = vpop.f32.mrb[0].mxu0
    %291 = vdwg.mxu0
    %v292 = vadd.f32 %v212, %v289
    %v293 = vld [vmem:[%s3] sm:$0xff]
    %v294 = vld [vmem:[%s7] sm:$0xff]
    %v295 = vld [vmem:[%s7 + $0x8] sm:$0xff]
    %v297 = vsel %vm218, %v293, 0
    %299 = vmatprep.subr.mxu0 0.0
    %300 = vmatpush1.msra.mxu0 %v294
    %301 = vmatprep.subr.mxu0 0.0
    %302 = vmatpush1.msra.mxu0 %v295
    %303 = vmatprep.subr.mxu0 0.0
    %304 = vmatpush1.msra.mxu0 0.0
    %305 = vmatprep.subr.mxu0 0.0
    %306 = vmatpush1.msra.mxu0 0.0
    %307 = vmatprep.subr.mxu0 0.0
    %308 = vmatpush1.msra.mxu0 0.0
    %309 = vmatprep.subr.mxu0 0.0
    %310 = vmatpush1.msra.mxu0 0.0
    %311 = vmatprep.subr.mxu0 0.0
    %312 = vmatpush1.msra.mxu0 0.0
    %313 = vmatprep.subr.mxu0 0.0
    %314 = vmatpush1.msra.mxu0 0.0
    %315 = vmatprep.subr.mxu0 0.0
    %316 = vmatpush1.msra.mxu0 0.0
    %317 = vmatprep.subr.mxu0 0.0
    %318 = vmatpush1.msra.mxu0 0.0
    %319 = vmatprep.subr.mxu0 0.0
    %320 = vmatpush1.msra.mxu0 0.0
    %321 = vmatprep.subr.mxu0 0.0
    %322 = vmatpush1.msra.mxu0 0.0
    %323 = vmatprep.subr.mxu0 0.0
    %324 = vmatpush1.msra.mxu0 0.0
    %325 = vmatprep.subr.mxu0 0.0
    %326 = vmatpush1.msra.mxu0 0.0
    %327 = vmatprep.subr.mxu0 0.0
    %328 = vmatpush1.msra.mxu0 0.0
    %329 = vmatprep.subr.mxu0 0.0
    %330 = vmatpush1.msra.mxu0 0.0
    %331 = vmatprep.subr.mxu0 0.0
    %332 = vmatpush1.msra.mxu0 0.0
    %333 = vmatprep.subr.mxu0 0.0
    %334 = vmatpush1.msra.mxu0 0.0
    %335 = vmatprep.subr.mxu0 0.0
    %336 = vmatpush1.msra.mxu0 0.0
    %337 = vmatprep.subr.mxu0 0.0
    %338 = vmatpush1.msra.mxu0 0.0
    %339 = vmatprep.subr.mxu0 0.0
    %340 = vmatpush1.msra.mxu0 0.0
    %341 = vmatprep.subr.mxu0 0.0
    %342 = vmatpush1.msra.mxu0 0.0
    %343 = vmatprep.subr.mxu0 0.0
    %344 = vmatpush1.msra.mxu0 0.0
    %345 = vmatprep.subr.mxu0 0.0
    %346 = vmatpush1.msra.mxu0 0.0
    %347 = vmatprep.subr.mxu0 0.0
    %348 = vmatpush1.msra.mxu0 0.0
    %349 = vmatprep.subr.mxu0 0.0
    %350 = vmatpush1.msra.mxu0 0.0
    %351 = vmatprep.subr.mxu0 0.0
    %352 = vmatpush1.msra.mxu0 0.0
    %353 = vmatprep.subr.mxu0 0.0
    %354 = vmatpush1.msra.mxu0 0.0
    %355 = vmatprep.subr.mxu0 0.0
    %356 = vmatpush1.msra.mxu0 0.0
    %357 = vmatprep.subr.mxu0 0.0
    %358 = vmatpush1.msra.mxu0 0.0
    %359 = vmatprep.subr.mxu0 0.0
    %360 = vmatpush1.msra.mxu0 0.0
    %361 = vmatprep.subr.mxu0 0.0
    %362 = vmatpush1.msra.mxu0 0.0
    %363 = vmatprep.mubr.f32.mxu0 0.0
    %364 = vmatmul.mubr.f32.gmra.mrb[0].mxu0 %v297
    %v365 = vpop.f32.mrb[0].mxu0
    %v366 = vadd.f32 0.0, %v365
    %v367 = vpop.f32.mrb[0].mxu0
    %368 = vdwg.mxu0
    %v369 = vadd.f32 %v292, %v366
    %v370 = vld [vmem:[%s8] sm:$0x1]
    %v372 = vlaneseq
    %v373 = vshrl.u32 %v372, 7
    %v374 = vsub.s32 0, %v373
    %v375 = vrot.slane %v370, %v374
    %v377 = vadd.f32 %v369, %v375
    %378 = vst [vmem:[#allocation7] sm:$0xff] %v377
    // Predicated region
    $region46: #{_fused_forward.1} parent=1 // pred_check
      _
    $region47: #{_fused_forward.1} parent=1 // pred_check_branch
      %380 = sbr.rel (0) target = $region49
    $region48: #{_fused_forward.1} parent=1 // pred_region
      %s382 = ssub.s32 128, 128
      %383 = vsyncadd [#allocation4], %s382
      %s385 = sshll.u32 [#allocation7], 4
      %s386 = int_to_ptr.vmem [resolvable:$true] %s385
      %388 = dma.vmem_to_hbm [thread:$0]  %s386, 128, %s9, [#allocation4]
    $region49: #{_fused_forward.1} parent=1 // pred_fallthru
      _
    // Predicated region
    $region50: #{_fused_forward.1} parent=1 // pred_check
      _
    $region51: #{_fused_forward.1} parent=1 // pred_check_branch
      %390 = sbr.rel (0) target = $region53
    $region52: #{_fused_forward.1} parent=1 // pred_region
      %391 = dma.done [#allocation4], 128
    $region53: #{_fused_forward.1} parent=1 // pred_fallthru
      _
    %392 = vsyncpa [#allocation3], 1
    %393 = vsyncpa [#allocation6], 1
    %394 = vsyncpa [#allocation4], 1

</llo_original>
